<compile_context>
chip_gen: v5e
topology: v5e:2x2
jax: 0.10.0
libtpu: 0.0.40
codegen_flags: <defaults>
</compile_context>

<pallas_src>
import functools

import jax
import jax.numpy as jnp
from jax.experimental import pallas as pl
from jax.experimental.pallas import tpu as pltpu


HIDDEN = 16     # pred heads consume 16 features (nn.Linear(16, 2))
OUT = 2         # each head produces 2 outputs
LANES = 128     # TPU lane width


def _round_up(a, b):
    return ((a + b - 1) // b) * b


def _causal_kernel(x_ref, w1_ref, b1_ref, w2_ref, b2_ref,
                   point_ref, low_ref, up_ref, *, sout):
    # synthetic st_net (Linear + ReLU), block-diagonal over the S samples that
    # share each 128-lane row:  (tk, 128) @ (128, S*16) -> (tk, S*16)
    h = jnp.dot(x_ref[...], w1_ref[...], preferred_element_type=jnp.float32)
    h = jnp.maximum(h + b1_ref[...], 0.0)

    # fused heads, columns ordered [point | low | up] (each S*2 lanes wide):
    # (tk, S*16) @ (S*16, 3*S*2) -> (tk, 3*S*2)
    o = jnp.dot(h, w2_ref[...], preferred_element_type=jnp.float32) + b2_ref[...]

    # Contiguous lane slices -> three lane-packed outputs that flatten for free
    # to (M, 2) row-major (no post-kernel transpose needed).
    point_ref[...] = o[:, 0:sout].astype(point_ref.dtype)
    low_ref[...] = o[:, sout:2 * sout].astype(low_ref.dtype)
    up_ref[...] = o[:, 2 * sout:3 * sout].astype(up_ref.dtype)


def _block_diag(w, s):
    """(k, j) per-sample weight -> (s*k, s*j) block-diagonal weight."""
    k, j = w.shape
    eye = jnp.eye(s, dtype=w.dtype)
    return jnp.einsum('st,kj->sktj', eye, w).reshape(s * k, s * j)


def causal_model_quantile_regress(x, params, *, tk_rows=2048):
    """
    x: (batch, window, nodes, feat_in) float32
    returns (point_predictions, quantile_predictions_low, quantile_predictions_up),
    each (batch, window, nodes, 2) — same return order as the PyTorch module.
    """
    B, T, N, F = x.shape
    # TODO(synk): support feature dims that do not divide 128 (needs per-row pad).
    assert LANES % F == 0
    S = LANES // F            # samples packed per 128-lane row
    SOUT = S * OUT            # lanes per head per row
    M = B * T * N

    # Lane-dense flat layout, NO transpose / NO copy when M % S == 0:
    # (B,T,N,F) -> (M,F) -> (M/S, 128) are contiguous row-major reshapes.
    M_al = _round_up(M, S)
    x2 = x.reshape(M, F)
    if M_al != M:
        # Only hit when M is not a multiple of 128//F; padded samples are
        # computed (finite: zeros -> bias) and sliced off below.
        x2 = jnp.pad(x2, ((0, M_al - M), (0, 0)))
    R = M_al // S
    x_flat = x2.reshape(R, LANES)

    # Block-diagonal parameters (built once, tiny).
    w1 = _block_diag(params["w_st"], S)                              # (128, S*16)
    b1 = jnp.tile(params["b_st"].reshape(-1), S).reshape(1, S * HIDDEN)
    w2 = jnp.concatenate(
        [_block_diag(params["w_point"], S),
         _block_diag(params["w_low"], S),
         _block_diag(params["w_up"], S)], axis=1)                    # (S*16, 3*S*2)
    b2 = jnp.concatenate(
        [jnp.tile(params["b_point"].reshape(-1), S),
         jnp.tile(params["b_low"].reshape(-1), S),
         jnp.tile(params["b_up"].reshape(-1), S)]).reshape(1, 3 * SOUT)

    # Row-tile: big enough that per-tile HBM traffic (~1.3 KB/row) dwarfs the
    # ~0.35us per-grid-step overhead, but keep >=4 steps for large problems so
    # both v7x TensorCores get >=2 double-buffered steps each.
    tk = min(tk_rows, _round_up(R, 8))
    if R >= 4 * 256:
        while tk > 256 and pl.cdiv(R, tk) < 4:
            tk //= 2
    grid = (pl.cdiv(R, tk),)   # ragged edge block is masked by Pallas (no pad)

    row_tile = lambda i: (i, 0)
    full = lambda i: (0, 0)

    out_struct = jax.ShapeDtypeStruct((R, SOUT), jnp.float32)
    kernel = pl.pallas_call(
        functools.partial(_causal_kernel, sout=SOUT),
        out_shape=(out_struct, out_struct, out_struct),
        grid=grid,
        in_specs=[
            pl.BlockSpec((tk, LANES), row_tile),        # x, lane-dense stream
            pl.BlockSpec((LANES, S * HIDDEN), full),    # st_net weight (block-diag)
            pl.BlockSpec((1, S * HIDDEN), full),        # st_net bias (tiled)
            pl.BlockSpec((S * HIDDEN, 3 * SOUT), full), # fused head weights
            pl.BlockSpec((1, 3 * SOUT), full),          # fused head biases
        ],
        out_specs=(
            pl.BlockSpec((tk, SOUT), row_tile),
            pl.BlockSpec((tk, SOUT), row_tile),
            pl.BlockSpec((tk, SOUT), row_tile),
        ),
        compiler_params=pltpu.CompilerParams(
            dimension_semantics=("parallel",),
            vmem_limit_bytes=32 * 1024 * 1024),
    )

    out_p, out_l, out_u = kernel(x_flat, w1, b1, w2, b2)

    def unflatten(o):
        o = o.reshape(M_al, OUT)          # free reshape (contiguous)
        if M_al != M:
            o = o[:M]
        return o.reshape(B, T, N, OUT)

    return unflatten(out_p), unflatten(out_l), unflatten(out_u)


def init_params(feat_in, key):
    """Deterministic parameter init (synthetic; not a checkpoint load)."""
    keys = jax.random.split(key, 8)

    def lin(kw, kb, fan_in, fan_out):
        bound = 1.0 / jnp.sqrt(fan_in)
        w = jax.random.uniform(kw, (fan_in, fan_out), jnp.float32, -bound, bound)
        b = jax.random.uniform(kb, (1, fan_out), jnp.float32, -bound, bound)
        return w, b

    w_st, b_st = lin(keys[0], keys[1], feat_in, HIDDEN)
    w_point, b_point = lin(keys[2], keys[3], HIDDEN, OUT)
    w_up, b_up = lin(keys[4], keys[5], HIDDEN, OUT)
    w_low, b_low = lin(keys[6], keys[7], HIDDEN, OUT)
    return dict(w_st=w_st, b_st=b_st,
                w_point=w_point, b_point=b_point,
                w_up=w_up, b_up=b_up,
                w_low=w_low, b_low=b_low)


def _reference(x, p):
    """Pure-JAX reference of the same forward pass (for correctness check)."""
    h = jnp.maximum(x @ p["w_st"] + p["b_st"][0], 0.0)
    point = h @ p["w_point"] + p["b_point"][0]
    qlow = h @ p["w_low"] + p["b_low"][0]
    qup = h @ p["w_up"] + p["b_up"][0]
    return point, qlow, qup


if __name__ == "__main__":
    key = jax.random.PRNGKey(0)
    k_x, k_p = jax.random.split(key)

    # small shapes: batch=2, output_window=8, num_nodes=16, feature_dim_in=4
    B, T, N, F = 2, 8, 16, 4
    x = jax.random.normal(k_x, (B, T, N, F), jnp.float32)
    params = init_params(F, k_p)

    fwd = jax.jit(causal_model_quantile_regress)
    point, qlow, qup = fwd(x, params)
    jax.block_until_ready((point, qlow, qup))

    ref_point, ref_qlow, ref_qup = _reference(x, params)
    assert point.shape == (B, T, N, 2)
    assert qlow.shape == (B, T, N, 2)
    assert qup.shape == (B, T, N, 2)
    assert jnp.allclose(point, ref_point, atol=1e-4)
    assert jnp.allclose(qlow, ref_qlow, atol=1e-4)
    assert jnp.allclose(qup, ref_qup, atol=1e-4)

    print("KERNEL_OK")
</pallas_src>

<mosaic_0001>
module attributes {stable_mosaic.version = 11 : i64} {
  func.func @_causal_kernel(%arg0: i32, %arg1: memref<8x128xf32, #tpu.memory_space<vmem>>, %arg2: memref<128x512xf32, #tpu.memory_space<vmem>>, %arg3: memref<1x512xf32, #tpu.memory_space<vmem>>, %arg4: memref<512x192xf32, #tpu.memory_space<vmem>>, %arg5: memref<1x192xf32, #tpu.memory_space<vmem>>, %arg6: memref<8x64xf32, #tpu.memory_space<vmem>>, %arg7: memref<8x64xf32, #tpu.memory_space<vmem>>, %arg8: memref<8x64xf32, #tpu.memory_space<vmem>>) attributes {dimension_semantics = [#tpu.dimension_semantics<parallel>], iteration_bounds = array<i64: 1>, scalar_prefetch = 0 : i64, scratch_operands = 0 : i64, tpu.core_type = #tpu.core_type<tc>, window_params = [{transform_indices = @transform_0, window_bounds = array<i64: 8, 128>}, {pipeline_mode = #tpu.pipeline_mode<synchronous>, transform_indices = @transform_1, window_bounds = array<i64: 128, 512>}, {pipeline_mode = #tpu.pipeline_mode<synchronous>, transform_indices = @transform_2, window_bounds = array<i64: 1, 512>}, {pipeline_mode = #tpu.pipeline_mode<synchronous>, transform_indices = @transform_3, window_bounds = array<i64: 512, 192>}, {pipeline_mode = #tpu.pipeline_mode<synchronous>, transform_indices = @transform_4, window_bounds = array<i64: 1, 192>}, {transform_indices = @transform_5, window_bounds = array<i64: 8, 64>}, {transform_indices = @transform_6, window_bounds = array<i64: 8, 64>}, {transform_indices = @transform_7, window_bounds = array<i64: 8, 64>}]} {
    %c0 = arith.constant 0 : index
    %c0_0 = arith.constant 0 : index
    %0 = vector.load %arg1[%c0, %c0_0] : memref<8x128xf32, #tpu.memory_space<vmem>>, vector<8x128xf32>
    %c0_1 = arith.constant 0 : index
    %c0_2 = arith.constant 0 : index
    %1 = vector.load %arg2[%c0_1, %c0_2] : memref<128x512xf32, #tpu.memory_space<vmem>>, vector<128x512xf32>
    %cst = arith.constant dense<0.000000e+00> : vector<8x512xf32>
    %2 = tpu.matmul %0, %1, %cst {dimension_numbers = #tpu.dot_dimension_numbers<[1], [0], [0], [1], [0, 0, 1, 1], [], []>} : vector<8x128xf32>, vector<128x512xf32>, vector<8x512xf32> -> vector<8x512xf32>
    %c0_3 = arith.constant 0 : index
    %c0_4 = arith.constant 0 : index
    %3 = vector.load %arg3[%c0_3, %c0_4] : memref<1x512xf32, #tpu.memory_space<vmem>>, vector<1x512xf32>
    %4 = vector.broadcast %3 : vector<1x512xf32> to vector<8x512xf32>
    %5 = arith.addf %2, %4 : vector<8x512xf32>
    %cst_5 = arith.constant 0.000000e+00 : f32
    %6 = vector.broadcast %cst_5 : f32 to vector<8x512xf32>
    %7 = arith.maximumf %5, %6 : vector<8x512xf32>
    %c0_6 = arith.constant 0 : index
    %c0_7 = arith.constant 0 : index
    %8 = vector.load %arg4[%c0_6, %c0_7] : memref<512x192xf32, #tpu.memory_space<vmem>>, vector<512x192xf32>
    %cst_8 = arith.constant dense<0.000000e+00> : vector<8x192xf32>
    %9 = tpu.matmul %7, %8, %cst_8 {dimension_numbers = #tpu.dot_dimension_numbers<[1], [0], [0], [1], [0, 0, 1, 1], [], []>} : vector<8x512xf32>, vector<512x192xf32>, vector<8x192xf32> -> vector<8x192xf32>
    %c0_9 = arith.constant 0 : index
    %c0_10 = arith.constant 0 : index
    %10 = vector.load %arg5[%c0_9, %c0_10] : memref<1x192xf32, #tpu.memory_space<vmem>>, vector<1x192xf32>
    %11 = vector.broadcast %10 : vector<1x192xf32> to vector<8x192xf32>
    %12 = arith.addf %9, %11 : vector<8x192xf32>
    %13 = vector.extract_strided_slice %12 {offsets = [0, 0], sizes = [8, 64], strides = [1, 1]} : vector<8x192xf32> to vector<8x64xf32>
    %c0_11 = arith.constant 0 : index
    %c0_12 = arith.constant 0 : index
    %14 = vector.load %arg6[%c0_11, %c0_12] : memref<8x64xf32, #tpu.memory_space<vmem>>, vector<8x64xf32>
    tpu.vector_store %arg6[%c0_11, %c0_12], %13 {strides = array<i32>} : memref<8x64xf32, #tpu.memory_space<vmem>>, vector<8x64xf32>,
    %15 = vector.extract_strided_slice %12 {offsets = [0, 64], sizes = [8, 64], strides = [1, 1]} : vector<8x192xf32> to vector<8x64xf32>
    %c0_13 = arith.constant 0 : index
    %c0_14 = arith.constant 0 : index
    %16 = vector.load %arg7[%c0_13, %c0_14] : memref<8x64xf32, #tpu.memory_space<vmem>>, vector<8x64xf32>
    tpu.vector_store %arg7[%c0_13, %c0_14], %15 {strides = array<i32>} : memref<8x64xf32, #tpu.memory_space<vmem>>, vector<8x64xf32>,
    %17 = vector.extract_strided_slice %12 {offsets = [0, 128], sizes = [8, 64], strides = [1, 1]} : vector<8x192xf32> to vector<8x64xf32>
    %c0_15 = arith.constant 0 : index
    %c0_16 = arith.constant 0 : index
    %18 = vector.load %arg8[%c0_15, %c0_16] : memref<8x64xf32, #tpu.memory_space<vmem>>, vector<8x64xf32>
    tpu.vector_store %arg8[%c0_15, %c0_16], %17 {strides = array<i32>} : memref<8x64xf32, #tpu.memory_space<vmem>>, vector<8x64xf32>,
    return
  }
  func.func @transform_0(%arg0: i32) -> (i32, i32) {
    %c0_i32 = arith.constant 0 : i32
    %c0_i32_0 = arith.constant 0 : i32
    return %arg0, %c0_i32 : i32, i32
  }
  func.func @transform_1(%arg0: i32) -> (i32, i32) {
    %c0_i32 = arith.constant 0 : i32
    %c0_i32_0 = arith.constant 0 : i32
    %c0_i32_1 = arith.constant 0 : i32
    return %c0_i32, %c0_i32_0 : i32, i32
  }
  func.func @transform_2(%arg0: i32) -> (i32, i32) {
    %c0_i32 = arith.constant 0 : i32
    %c0_i32_0 = arith.constant 0 : i32
    %c0_i32_1 = arith.constant 0 : i32
    return %c0_i32, %c0_i32_0 : i32, i32
  }
  func.func @transform_3(%arg0: i32) -> (i32, i32) {
    %c0_i32 = arith.constant 0 : i32
    %c0_i32_0 = arith.constant 0 : i32
    %c0_i32_1 = arith.constant 0 : i32
    return %c0_i32, %c0_i32_0 : i32, i32
  }
  func.func @transform_4(%arg0: i32) -> (i32, i32) {
    %c0_i32 = arith.constant 0 : i32
    %c0_i32_0 = arith.constant 0 : i32
    %c0_i32_1 = arith.constant 0 : i32
    return %c0_i32, %c0_i32_0 : i32, i32
  }
  func.func @transform_5(%arg0: i32) -> (i32, i32) {
    %c0_i32 = arith.constant 0 : i32
    %c0_i32_0 = arith.constant 0 : i32
    return %arg0, %c0_i32 : i32, i32
  }
  func.func @transform_6(%arg0: i32) -> (i32, i32) {
    %c0_i32 = arith.constant 0 : i32
    %c0_i32_0 = arith.constant 0 : i32
    return %arg0, %c0_i32 : i32, i32
  }
  func.func @transform_7(%arg0: i32) -> (i32, i32) {
    %c0_i32 = arith.constant 0 : i32
    %c0_i32_0 = arith.constant 0 : i32
    return %arg0, %c0_i32 : i32, i32
  }
}

</mosaic_0001>

<llo_original>
// kernel: tile.22
$region0: #{tile.22}
  #allocation0 [shape = 's32[1]{0}', space=sflag, size = 0x4, scoped, tag = 'scoped memory for tile.22']
  %s0 = inlined_call_operand.vmem [shape: f32[2], index: 0, kind: input, shape index: {}]
  %s1 = inlined_call_operand.vmem [shape: f32[32,2], index: 1, kind: output, shape index: {}]
  // Predicated region
  $region2: #{tile.22} parent=0 // pred_check
    _
  $region3: #{tile.22} parent=0 // pred_check_branch
    %3 = sbr.rel (0) target = $region5
  $region4: #{tile.22} parent=0 // pred_region
    _
  $region5: #{tile.22} parent=0 // pred_fallthru
    _
  %v4 = vld [vmem:[%s0] ss:$0 sm:$0xff]
  %5 = vst [vmem:[%s1] sm:$0xff] %v4
  %s6 = scalar_lea.vmem %s1, 8
  %7 = vst [vmem:[%s6] sm:$0xff] %v4
  %s8 = scalar_lea.vmem %s1, 16
  %9 = vst [vmem:[%s8] sm:$0xff] %v4
  %s10 = scalar_lea.vmem %s1, 24
  %11 = vst [vmem:[%s10] sm:$0xff] %v4

// kernel: tile.23
$region0: #{tile.23}
  %s0 = inlined_call_operand.vmem [shape: f32[32,2], index: 0, kind: input, shape index: {}]
  %s1 = inlined_call_operand.vmem [shape: f32[64], index: 1, kind: output, shape index: {}]
  $region1: #{tile.23} parent=0
    #allocation0 [shape = 'u8[4096]{0}', space=vmem, size = 0x1000, scoped, tag = 'scoped mem for output reshape']
    %v2 = vld [vmem:[%s0] sm:$0x1]
    %vm3 = vcmask 15360
    %4 = vst.msk [vmem:[#allocation0] sm:$0x1] %vm3, %v2
    %s5 = scalar_lea.vmem %s0, 31
    %v6 = vld [vmem:[%s5] sm:$0x1]
    %7 = vrot.lane.b32.xlu0 %v6, 62
    %v8 = vpop.permute.xlu0 %7
    %vm9 = vcmask 523760
    %10 = vst.msk [vmem:[#allocation0] sm:$0x1] %vm9, %v8
    %s11 = scalar_lea.vmem %s0, 30
    %v12 = vld [vmem:[%s11] sm:$0x1]
    %13 = vrot.lane.b32.xlu0 %v12, 60
    %v14 = vpop.permute.xlu0 %13
    %vm15 = vcmask 507360
    %16 = vst.msk [vmem:[#allocation0] sm:$0x1] %vm15, %v14
    %s17 = scalar_lea.vmem %s0, 29
    %v18 = vld [vmem:[%s17] sm:$0x1]
    %19 = vrot.lane.b32.xlu0 %v18, 58
    %v20 = vpop.permute.xlu0 %19
    %vm21 = vcmask 490960
    %22 = vst.msk [vmem:[#allocation0] sm:$0x1] %vm21, %v20
    %s23 = scalar_lea.vmem %s0, 28
    %v24 = vld [vmem:[%s23] sm:$0x1]
    %25 = vrot.lane.b32.xlu0 %v24, 56
    %v26 = vpop.permute.xlu0 %25
    %vm27 = vcmask 474560
    %28 = vst.msk [vmem:[#allocation0] sm:$0x1] %vm27, %v26
    %s29 = scalar_lea.vmem %s0, 27
    %v30 = vld [vmem:[%s29] sm:$0x1]
    %31 = vrot.lane.b32.xlu0 %v30, 54
    %v32 = vpop.permute.xlu0 %31
    %vm33 = vcmask 458160
    %34 = vst.msk [vmem:[#allocation0] sm:$0x1] %vm33, %v32
    %s35 = scalar_lea.vmem %s0, 26
    %v36 = vld [vmem:[%s35] sm:$0x1]
    %37 = vrot.lane.b32.xlu0 %v36, 52
    %v38 = vpop.permute.xlu0 %37
    %vm39 = vcmask 441760
    %40 = vst.msk [vmem:[#allocation0] sm:$0x1] %vm39, %v38
    %s41 = scalar_lea.vmem %s0, 25
    %v42 = vld [vmem:[%s41] sm:$0x1]
    %43 = vrot.lane.b32.xlu0 %v42, 50
    %v44 = vpop.permute.xlu0 %43
    %vm45 = vcmask 425360
    %46 = vst.msk [vmem:[#allocation0] sm:$0x1] %vm45, %v44
    %s47 = scalar_lea.vmem %s0, 24
    %v48 = vld [vmem:[%s47] sm:$0x1]
    %49 = vrot.lane.b32.xlu0 %v48, 48
    %v50 = vpop.permute.xlu0 %49
    %vm51 = vcmask 408960
    %52 = vst.msk [vmem:[#allocation0] sm:$0x1] %vm51, %v50
    %s53 = scalar_lea.vmem %s0, 23
    %v54 = vld [vmem:[%s53] sm:$0x1]
    %55 = vrot.lane.b32.xlu0 %v54, 46
    %v56 = vpop.permute.xlu0 %55
    %vm57 = vcmask 392560
    %58 = vst.msk [vmem:[#allocation0] sm:$0x1] %vm57, %v56
    %s59 = scalar_lea.vmem %s0, 22
    %v60 = vld [vmem:[%s59] sm:$0x1]
    %61 = vrot.lane.b32.xlu0 %v60, 44
    %v62 = vpop.permute.xlu0 %61
    %vm63 = vcmask 376160
    %64 = vst.msk [vmem:[#allocation0] sm:$0x1] %vm63, %v62
    %s65 = scalar_lea.vmem %s0, 21
    %v66 = vld [vmem:[%s65] sm:$0x1]
    %67 = vrot.lane.b32.xlu0 %v66, 42
    %v68 = vpop.permute.xlu0 %67
    %vm69 = vcmask 359760
    %70 = vst.msk [vmem:[#allocation0] sm:$0x1] %vm69, %v68
    %s71 = scalar_lea.vmem %s0, 20
    %v72 = vld [vmem:[%s71] sm:$0x1]
    %73 = vrot.lane.b32.xlu0 %v72, 40
    %v74 = vpop.permute.xlu0 %73
    %vm75 = vcmask 343360
    %76 = vst.msk [vmem:[#allocation0] sm:$0x1] %vm75, %v74
    %s77 = scalar_lea.vmem %s0, 19
    %v78 = vld [vmem:[%s77] sm:$0x1]
    %79 = vrot.lane.b32.xlu0 %v78, 38
    %v80 = vpop.permute.xlu0 %79
    %vm81 = vcmask 326960
    %82 = vst.msk [vmem:[#allocation0] sm:$0x1] %vm81, %v80
    %s83 = scalar_lea.vmem %s0, 18
    %v84 = vld [vmem:[%s83] sm:$0x1]
    %85 = vrot.lane.b32.xlu0 %v84, 36
    %v86 = vpop.permute.xlu0 %85
    %vm87 = vcmask 310560
    %88 = vst.msk [vmem:[#allocation0] sm:$0x1] %vm87, %v86
    %s89 = scalar_lea.vmem %s0, 17
    %v90 = vld [vmem:[%s89] sm:$0x1]
    %91 = vrot.lane.b32.xlu0 %v90, 34
    %v92 = vpop.permute.xlu0 %91
    %vm93 = vcmask 294160
    %94 = vst.msk [vmem:[#allocation0] sm:$0x1] %vm93, %v92
    %s95 = scalar_lea.vmem %s0, 16
    %v96 = vld [vmem:[%s95] sm:$0x1]
    %97 = vrot.lane.b32.xlu0 %v96, 32
    %v98 = vpop.permute.xlu0 %97
    %vm99 = vcmask 277760
    %100 = vst.msk [vmem:[#allocation0] sm:$0x1] %vm99, %v98
    %s101 = scalar_lea.vmem %s0, 15
    %v102 = vld [vmem:[%s101] sm:$0x1]
    %103 = vrot.lane.b32.xlu0 %v102, 30
    %v104 = vpop.permute.xlu0 %103
    %vm105 = vcmask 261360
    %106 = vst.msk [vmem:[#allocation0] sm:$0x1] %vm105, %v104
    %s107 = scalar_lea.vmem %s0, 14
    %v108 = vld [vmem:[%s107] sm:$0x1]
    %109 = vrot.lane.b32.xlu0 %v108, 28
    %v110 = vpop.permute.xlu0 %109
    %vm111 = vcmask 244960
    %112 = vst.msk [vmem:[#allocation0] sm:$0x1] %vm111, %v110
    %s113 = scalar_lea.vmem %s0, 13
    %v114 = vld [vmem:[%s113] sm:$0x1]
    %115 = vrot.lane.b32.xlu0 %v114, 26
    %v116 = vpop.permute.xlu0 %115
    %vm117 = vcmask 228560
    %118 = vst.msk [vmem:[#allocation0] sm:$0x1] %vm117, %v116
    %s119 = scalar_lea.vmem %s0, 12
    %v120 = vld [vmem:[%s119] sm:$0x1]
    %121 = vrot.lane.b32.xlu0 %v120, 24
    %v122 = vpop.permute.xlu0 %121
    %vm123 = vcmask 212160
    %124 = vst.msk [vmem:[#allocation0] sm:$0x1] %vm123, %v122
    %s125 = scalar_lea.vmem %s0, 11
    %v126 = vld [vmem:[%s125] sm:$0x1]
    %127 = vrot.lane.b32.xlu0 %v126, 22
    %v128 = vpop.permute.xlu0 %127
    %vm129 = vcmask 195760
    %130 = vst.msk [vmem:[#allocation0] sm:$0x1] %vm129, %v128
    %s131 = scalar_lea.vmem %s0, 10
    %v132 = vld [vmem:[%s131] sm:$0x1]
    %133 = vrot.lane.b32.xlu0 %v132, 20
    %v134 = vpop.permute.xlu0 %133
    %vm135 = vcmask 179360
    %136 = vst.msk [vmem:[#allocation0] sm:$0x1] %vm135, %v134
    %s137 = scalar_lea.vmem %s0, 9
    %v138 = vld [vmem:[%s137] sm:$0x1]
    %139 = vrot.lane.b32.xlu0 %v138, 18
    %v140 = vpop.permute.xlu0 %139
    %vm141 = vcmask 162960
    %142 = vst.msk [vmem:[#allocation0] sm:$0x1] %vm141, %v140
    %s143 = scalar_lea.vmem %s0, 8
    %v144 = vld [vmem:[%s143] sm:$0x1]
    %145 = vrot.lane.b32.xlu0 %v144, 16
    %v146 = vpop.permute.xlu0 %145
    %vm147 = vcmask 146560
    %148 = vst.msk [vmem:[#allocation0] sm:$0x1] %vm147, %v146
    %s149 = scalar_lea.vmem %s0, 7
    %v150 = vld [vmem:[%s149] sm:$0x1]
    %151 = vrot.lane.b32.xlu0 %v150, 14
    %v152 = vpop.permute.xlu0 %151
    %vm153 = vcmask 130160
    %154 = vst.msk [vmem:[#allocation0] sm:$0x1] %vm153, %v152
    %s155 = scalar_lea.vmem %s0, 6
    %v156 = vld [vmem:[%s155] sm:$0x1]
    %157 = vrot.lane.b32.xlu0 %v156, 12
    %v158 = vpop.permute.xlu0 %157
    %vm159 = vcmask 113760
    %160 = vst.msk [vmem:[#allocation0] sm:$0x1] %vm159, %v158
    %s161 = scalar_lea.vmem %s0, 5
    %v162 = vld [vmem:[%s161] sm:$0x1]
    %163 = vrot.lane.b32.xlu0 %v162, 10
    %v164 = vpop.permute.xlu0 %163
    %vm165 = vcmask 97360
    %166 = vst.msk [vmem:[#allocation0] sm:$0x1] %vm165, %v164
    %s167 = scalar_lea.vmem %s0, 4
    %v168 = vld [vmem:[%s167] sm:$0x1]
    %169 = vrot.lane.b32.xlu0 %v168, 8
    %v170 = vpop.permute.xlu0 %169
    %vm171 = vcmask 80960
    %172 = vst.msk [vmem:[#allocation0] sm:$0x1] %vm171, %v170
    %s173 = scalar_lea.vmem %s0, 3
    %v174 = vld [vmem:[%s173] sm:$0x1]
    %175 = vrot.lane.b32.xlu0 %v174, 6
    %v176 = vpop.permute.xlu0 %175
    %vm177 = vcmask 64560
    %178 = vst.msk [vmem:[#allocation0] sm:$0x1] %vm177, %v176
    %s179 = scalar_lea.vmem %s0, 2
    %v180 = vld [vmem:[%s179] sm:$0x1]
    %181 = vrot.lane.b32.xlu0 %v180, 4
    %v182 = vpop.permute.xlu0 %181
    %vm183 = vcmask 48160
    %184 = vst.msk [vmem:[#allocation0] sm:$0x1] %vm183, %v182
    %s185 = scalar_lea.vmem %s0, 1
    %v186 = vld [vmem:[%s185] sm:$0x1]
    %187 = vrot.lane.b32.xlu0 %v186, 2
    %v188 = vpop.permute.xlu0 %187
    %vm189 = vcmask 31760
    %190 = vst.msk [vmem:[#allocation0] sm:$0x1] %vm189, %v188
    %s192 = ssub.s32 2, 1
    %v193 = vld [vmem:[#allocation0] sm:%s192]
    %s195 = ssub.s32 2, 1
    %196 = vst [vmem:[%s1] sm:%s195] %v193

// kernel: tile.18
$region0: #{tile.18}
  #allocation0 [shape = 's32[1]{0}', space=sflag, size = 0x4, scoped, tag = 'scoped memory for tile.18']
  %s0 = inlined_call_operand.vmem [shape: f32[16], index: 0, kind: input, shape index: {}]
  %s1 = inlined_call_operand.vmem [shape: f32[32,16], index: 1, kind: output, shape index: {}]
  // Predicated region
  $region2: #{tile.18} parent=0 // pred_check
    _
  $region3: #{tile.18} parent=0 // pred_check_branch
    %3 = sbr.rel (0) target = $region5
  $region4: #{tile.18} parent=0 // pred_region
    _
  $region5: #{tile.18} parent=0 // pred_fallthru
    _
  %v4 = vld [vmem:[%s0] ss:$0 sm:$0xff]
  %5 = vst [vmem:[%s1] sm:$0xff] %v4
  %s6 = scalar_lea.vmem %s1, 8
  %7 = vst [vmem:[%s6] sm:$0xff] %v4
  %s8 = scalar_lea.vmem %s1, 16
  %9 = vst [vmem:[%s8] sm:$0xff] %v4
  %s10 = scalar_lea.vmem %s1, 24
  %11 = vst [vmem:[%s10] sm:$0xff] %v4

// kernel: tile.19
$region0: #{tile.19}
  %s0 = inlined_call_operand.vmem [shape: f32[32,16], index: 0, kind: input, shape index: {}]
  %s1 = inlined_call_operand.vmem [shape: f32[1,512], index: 1, kind: output, shape index: {}]
  $region1: #{tile.19} parent=0
    #allocation0 [shape = 'u8[16384]{0}', space=vmem, size = 0x4000, scoped, tag = 'scoped mem for output reshape']
    %v2 = vld [vmem:[%s0] ss:$8 sm:$0xf]
    %vm3 = vcmask 130048
    %4 = vst.msk [vmem:[#allocation0] ss:$8 sm:$0xf] %vm3, %v2
    %s5 = scalar_lea.vmem %s0, 7
    %v6 = vld [vmem:[%s5] ss:$8 sm:$0xf]
    %7 = vrot.lane.b32.xlu0 %v6, 112
    %v8 = vpop.permute.xlu0 %7
    %vm9 = vcmask 1048448
    %10 = vst.msk [vmem:[#allocation0] ss:$8 sm:$0xf] %vm9, %v8
    %s11 = scalar_lea.vmem %s0, 6
    %v12 = vld [vmem:[%s11] ss:$8 sm:$0xf]
    %13 = vrot.lane.b32.xlu0 %v12, 96
    %v14 = vpop.permute.xlu0 %13
    %vm15 = vcmask 917248
    %16 = vst.msk [vmem:[#allocation0] ss:$8 sm:$0xf] %vm15, %v14
    %s17 = scalar_lea.vmem %s0, 5
    %v18 = vld [vmem:[%s17] ss:$8 sm:$0xf]
    %19 = vrot.lane.b32.xlu0 %v18, 80
    %v20 = vpop.permute.xlu0 %19
    %vm21 = vcmask 786048
    %22 = vst.msk [vmem:[#allocation0] ss:$8 sm:$0xf] %vm21, %v20
    %s23 = scalar_lea.vmem %s0, 4
    %v24 = vld [vmem:[%s23] ss:$8 sm:$0xf]
    %25 = vrot.lane.b32.xlu0 %v24, 64
    %v26 = vpop.permute.xlu0 %25
    %vm27 = vcmask 654848
    %28 = vst.msk [vmem:[#allocation0] ss:$8 sm:$0xf] %vm27, %v26
    %s29 = scalar_lea.vmem %s0, 3
    %v30 = vld [vmem:[%s29] ss:$8 sm:$0xf]
    %31 = vrot.lane.b32.xlu0 %v30, 48
    %v32 = vpop.permute.xlu0 %31
    %vm33 = vcmask 523648
    %34 = vst.msk [vmem:[#allocation0] ss:$8 sm:$0xf] %vm33, %v32
    %s35 = scalar_lea.vmem %s0, 2
    %v36 = vld [vmem:[%s35] ss:$8 sm:$0xf]
    %37 = vrot.lane.b32.xlu0 %v36, 32
    %v38 = vpop.permute.xlu0 %37
    %vm39 = vcmask 392448
    %40 = vst.msk [vmem:[#allocation0] ss:$8 sm:$0xf] %vm39, %v38
    %s41 = scalar_lea.vmem %s0, 1
    %v42 = vld [vmem:[%s41] ss:$8 sm:$0xf]
    %43 = vrot.lane.b32.xlu0 %v42, 16
    %v44 = vpop.permute.xlu0 %43
    %vm45 = vcmask 261248
    %46 = vst.msk [vmem:[#allocation0] ss:$8 sm:$0xf] %vm45, %v44
    %s48 = ssub.s32 2, 1
    %v49 = vld [vmem:[#allocation0] sm:%s48]
    %s51 = ssub.s32 2, 1
    %52 = vst [vmem:[%s1] sm:%s51] %v49
    %s53 = scalar_lea.vmem [#allocation0], 8
    %v54 = vld [vmem:[%s53] sm:%s48]
    %s56 = ssub.s32 2, 1
    %s57 = scalar_lea.vmem %s1, 1
    %58 = vst [vmem:[%s57] sm:%s56] %v54
    %s59 = scalar_lea.vmem [#allocation0], 16
    %v60 = vld [vmem:[%s59] sm:%s48]
    %s62 = ssub.s32 2, 1
    %s63 = scalar_lea.vmem %s1, 2
    %64 = vst [vmem:[%s63] sm:%s62] %v60
    %s65 = scalar_lea.vmem [#allocation0], 24
    %v66 = vld [vmem:[%s65] sm:%s48]
    %s68 = ssub.s32 2, 1
    %s69 = scalar_lea.vmem %s1, 3
    %70 = vst [vmem:[%s69] sm:%s68] %v66

// kernel: causal_model_quantile_regress.1
$region0: #{causal_model_quantile_regress.1}
  #allocation0 [shape = 'u32[]', space=smem, size = 0x4, offset = 0x4, fixed_abs, tag = 'smem constant byte address 0x4 - core index']
  #allocation1 [shape = 'u32[72,128]{1,0:T(1,128)}', space=vmem, size = 0x9000, scoped, tag = 'internal scratch']
  %s0 = inlined_call_operand.vmem [shape: f32[8,128], index: 0, kind: input, shape index: {}]
  %s1 = inlined_call_operand.vmem [shape: f32[128,512], index: 1, kind: input, shape index: {}]
  %s2 = inlined_call_operand.vmem [shape: f32[1,512], index: 2, kind: input, shape index: {}]
  %s3 = inlined_call_operand.vmem [shape: f32[512,192], index: 3, kind: input, shape index: {}]
  %s4 = inlined_call_operand.vmem [shape: f32[1,192], index: 4, kind: input, shape index: {}]
  %s5 = inlined_call_operand.vmem [shape: f32[8,64], index: 5, kind: output, shape index: {0}]
  %s6 = inlined_call_operand.vmem [shape: f32[8,64], index: 6, kind: output, shape index: {1}]
  %s7 = inlined_call_operand.vmem [shape: f32[8,64], index: 7, kind: output, shape index: {2}]
  %8 = xla_tuple %s5, %s6, %s7
  %s9 = sld [smem:[#allocation0]]
  $region46: #{causal_model_quantile_regress.1} parent=0
    _
  %s11 = ssub.s32 1, %s9
  %s12 = scalar_select 0, %s11, %s9
  // Predicated region
  $region2: #{causal_model_quantile_regress.1} parent=0 // pred_check
    _
  $region3: #{causal_model_quantile_regress.1} parent=0 // pred_check_branch
    %14 = sbr.rel (0) target = $region5
  $region4: #{causal_model_quantile_regress.1} parent=0 // pred_region
    _
  $region5: #{causal_model_quantile_regress.1} parent=0 // pred_fallthru
    _
  // Predicated region
  $region6: #{causal_model_quantile_regress.1} parent=0 // pred_check
    _
  $region7: #{causal_model_quantile_regress.1} parent=0 // pred_check_branch
    %16 = sbr.rel (0) target = $region9
  $region8: #{causal_model_quantile_regress.1} parent=0 // pred_region
    _
  $region9: #{causal_model_quantile_regress.1} parent=0 // pred_fallthru
    _
  // Predicated region
  $region10: #{causal_model_quantile_regress.1} parent=0 // pred_check
    _
  $region11: #{causal_model_quantile_regress.1} parent=0 // pred_check_branch
    %18 = sbr.rel (0) target = $region13
  $region12: #{causal_model_quantile_regress.1} parent=0 // pred_region
    _
  $region13: #{causal_model_quantile_regress.1} parent=0 // pred_fallthru
    _
  // Predicated region
  $region14: #{causal_model_quantile_regress.1} parent=0 // pred_check
    _
  $region15: #{causal_model_quantile_regress.1} parent=0 // pred_check_branch
    %20 = sbr.rel (0) target = $region17
  $region16: #{causal_model_quantile_regress.1} parent=0 // pred_region
    _
  $region17: #{causal_model_quantile_regress.1} parent=0 // pred_fallthru
    _
  // Predicated region
  $region18: #{causal_model_quantile_regress.1} parent=0 // pred_check
    _
  $region19: #{causal_model_quantile_regress.1} parent=0 // pred_check_branch
    %22 = sbr.rel (0) target = $region21
  $region20: #{causal_model_quantile_regress.1} parent=0 // pred_region
    _
  $region21: #{causal_model_quantile_regress.1} parent=0 // pred_fallthru
    _
  %v23 = vld [vmem:[%s0] sm:$0xff]
  %v24 = vld [vmem:[%s1] sm:$0xff]
  %v25 = vld [vmem:[%s1 + $0x8] sm:$0xff]
  %v26 = vld [vmem:[%s1 + $0x10] sm:$0xff]
  %v27 = vld [vmem:[%s1 + $0x18] sm:$0xff]
  %v28 = vld [vmem:[%s1 + $0x20] sm:$0xff]
  %v29 = vld [vmem:[%s1 + $0x28] sm:$0xff]
  %v30 = vld [vmem:[%s1 + $0x30] sm:$0xff]
  %v31 = vld [vmem:[%s1 + $0x38] sm:$0xff]
  %v32 = vld [vmem:[%s1 + $0x40] sm:$0xff]
  %v33 = vld [vmem:[%s1 + $0x48] sm:$0xff]
  %v34 = vld [vmem:[%s1 + $0x50] sm:$0xff]
  %v35 = vld [vmem:[%s1 + $0x58] sm:$0xff]
  %v36 = vld [vmem:[%s1 + $0x60] sm:$0xff]
  %v37 = vld [vmem:[%s1 + $0x68] sm:$0xff]
  %v38 = vld [vmem:[%s1 + $0x70] sm:$0xff]
  %v39 = vld [vmem:[%s1 + $0x78] sm:$0xff]
  %v40 = vld [vmem:[%s1 + $0x80] sm:$0xff]
  %v41 = vld [vmem:[%s1 + $0x88] sm:$0xff]
  %v42 = vld [vmem:[%s1 + $0x90] sm:$0xff]
  %v43 = vld [vmem:[%s1 + $0x98] sm:$0xff]
  %v44 = vld [vmem:[%s1 + $0xa0] sm:$0xff]
  %v45 = vld [vmem:[%s1 + $0xa8] sm:$0xff]
  %v46 = vld [vmem:[%s1 + $0xb0] sm:$0xff]
  %v47 = vld [vmem:[%s1 + $0xb8] sm:$0xff]
  %v48 = vld [vmem:[%s1 + $0xc0] sm:$0xff]
  %v49 = vld [vmem:[%s1 + $0xc8] sm:$0xff]
  %v50 = vld [vmem:[%s1 + $0xd0] sm:$0xff]
  %v51 = vld [vmem:[%s1 + $0xd8] sm:$0xff]
  %v52 = vld [vmem:[%s1 + $0xe0] sm:$0xff]
  %v53 = vld [vmem:[%s1 + $0xe8] sm:$0xff]
  %v54 = vld [vmem:[%s1 + $0xf0] sm:$0xff]
  %v55 = vld [vmem:[%s1 + $0xf8] sm:$0xff]
  %v56 = vld [vmem:[%s1 + $0x100] sm:$0xff]
  %v57 = vld [vmem:[%s1 + $0x108] sm:$0xff]
  %v58 = vld [vmem:[%s1 + $0x110] sm:$0xff]
  %v59 = vld [vmem:[%s1 + $0x118] sm:$0xff]
  %v60 = vld [vmem:[%s1 + $0x120] sm:$0xff]
  %v61 = vld [vmem:[%s1 + $0x128] sm:$0xff]
  %v62 = vld [vmem:[%s1 + $0x130] sm:$0xff]
  %v63 = vld [vmem:[%s1 + $0x138] sm:$0xff]
  %v64 = vld [vmem:[%s1 + $0x140] sm:$0xff]
  %v65 = vld [vmem:[%s1 + $0x148] sm:$0xff]
  %v66 = vld [vmem:[%s1 + $0x150] sm:$0xff]
  %v67 = vld [vmem:[%s1 + $0x158] sm:$0xff]
  %v68 = vld [vmem:[%s1 + $0x160] sm:$0xff]
  %v69 = vld [vmem:[%s1 + $0x168] sm:$0xff]
  %v70 = vld [vmem:[%s1 + $0x170] sm:$0xff]
  %v71 = vld [vmem:[%s1 + $0x178] sm:$0xff]
  %v72 = vld [vmem:[%s1 + $0x180] sm:$0xff]
  %v73 = vld [vmem:[%s1 + $0x188] sm:$0xff]
  %v74 = vld [vmem:[%s1 + $0x190] sm:$0xff]
  %v75 = vld [vmem:[%s1 + $0x198] sm:$0xff]
  %v76 = vld [vmem:[%s1 + $0x1a0] sm:$0xff]
  %v77 = vld [vmem:[%s1 + $0x1a8] sm:$0xff]
  %v78 = vld [vmem:[%s1 + $0x1b0] sm:$0xff]
  %v79 = vld [vmem:[%s1 + $0x1b8] sm:$0xff]
  %v80 = vld [vmem:[%s1 + $0x1c0] sm:$0xff]
  %v81 = vld [vmem:[%s1 + $0x1c8] sm:$0xff]
  %v82 = vld [vmem:[%s1 + $0x1d0] sm:$0xff]
  %v83 = vld [vmem:[%s1 + $0x1d8] sm:$0xff]
  %v84 = vld [vmem:[%s1 + $0x1e0] sm:$0xff]
  %v85 = vld [vmem:[%s1 + $0x1e8] sm:$0xff]
  %v86 = vld [vmem:[%s1 + $0x1f0] sm:$0xff]
  %v87 = vld [vmem:[%s1 + $0x1f8] sm:$0xff]
  %v88 = vld [vmem:[%s2] sm:$0xf]
  %v90 = vperm.slane %v88, 0
  %v91 = vperm.slane %v88, 1
  %v92 = vperm.slane %v88, 2
  %v93 = vperm.slane %v88, 3
  %98 = vmatpush.msra.mxu0 %v84
  %99 = vmatpush.msra.mxu0 %v80
  %100 = vmatpush.msra.mxu0 %v76
  %101 = vmatpush.msra.mxu0 %v72
  %102 = vmatpush.msra.mxu0 %v68
  %103 = vmatpush.msra.mxu0 %v64
  %104 = vmatpush.msra.mxu0 %v60
  %105 = vmatpush.msra.mxu0 %v56
  %106 = vmatpush.msra.mxu0 %v52
  %107 = vmatpush.msra.mxu0 %v48
  %108 = vmatpush.msra.mxu0 %v44
  %109 = vmatpush.msra.mxu0 %v40
  %110 = vmatpush.msra.mxu0 %v36
  %111 = vmatpush.msra.mxu0 %v32
  %112 = vmatpush.msra.mxu0 %v28
  %113 = vmatpush.msra.mxu0 %v24
  %114 = vmatmul.f32.gmra.mxu0 %v23
  %v115 = vpop.f32.mrf.mxu0
  %v116 = vadd.f32 %v90, %v115
  %117 = vdwg.mxu0
  %118 = vmatpush.msra.mxu0 %v85
  %119 = vmatpush.msra.mxu0 %v81
  %120 = vmatpush.msra.mxu0 %v77
  %121 = vmatpush.msra.mxu0 %v73
  %122 = vmatpush.msra.mxu0 %v69
  %123 = vmatpush.msra.mxu0 %v65
  %124 = vmatpush.msra.mxu0 %v61
  %125 = vmatpush.msra.mxu0 %v57
  %126 = vmatpush.msra.mxu0 %v53
  %127 = vmatpush.msra.mxu0 %v49
  %128 = vmatpush.msra.mxu0 %v45
  %129 = vmatpush.msra.mxu0 %v41
  %130 = vmatpush.msra.mxu0 %v37
  %131 = vmatpush.msra.mxu0 %v33
  %132 = vmatpush.msra.mxu0 %v29
  %133 = vmatpush.msra.mxu0 %v25
  %134 = vmatmul.f32.gmra.mxu0 %v23
  %v135 = vpop.f32.mrf.mxu0
  %v136 = vadd.f32 %v91, %v135
  %137 = vdwg.mxu0
  %138 = vmatpush.msra.mxu0 %v86
  %139 = vmatpush.msra.mxu0 %v82
  %140 = vmatpush.msra.mxu0 %v78
  %141 = vmatpush.msra.mxu0 %v74
  %142 = vmatpush.msra.mxu0 %v70
  %143 = vmatpush.msra.mxu0 %v66
  %144 = vmatpush.msra.mxu0 %v62
  %145 = vmatpush.msra.mxu0 %v58
  %146 = vmatpush.msra.mxu0 %v54
  %147 = vmatpush.msra.mxu0 %v50
  %148 = vmatpush.msra.mxu0 %v46
  %149 = vmatpush.msra.mxu0 %v42
  %150 = vmatpush.msra.mxu0 %v38
  %151 = vmatpush.msra.mxu0 %v34
  %152 = vmatpush.msra.mxu0 %v30
  %153 = vmatpush.msra.mxu0 %v26
  %154 = vmatmul.f32.gmra.mxu0 %v23
  %v155 = vpop.f32.mrf.mxu0
  %v156 = vadd.f32 %v92, %v155
  %157 = vdwg.mxu0
  %158 = vmatpush.msra.mxu0 %v87
  %159 = vmatpush.msra.mxu0 %v83
  %160 = vmatpush.msra.mxu0 %v79
  %161 = vmatpush.msra.mxu0 %v75
  %162 = vmatpush.msra.mxu0 %v71
  %163 = vmatpush.msra.mxu0 %v67
  %164 = vmatpush.msra.mxu0 %v63
  %165 = vmatpush.msra.mxu0 %v59
  %166 = vmatpush.msra.mxu0 %v55
  %167 = vmatpush.msra.mxu0 %v51
  %168 = vmatpush.msra.mxu0 %v47
  %169 = vmatpush.msra.mxu0 %v43
  %170 = vmatpush.msra.mxu0 %v39
  %171 = vmatpush.msra.mxu0 %v35
  %172 = vmatpush.msra.mxu0 %v31
  %173 = vmatpush.msra.mxu0 %v27
  %174 = vmatmul.f32.gmra.mxu0 %v23
  %v175 = vpop.f32.mrf.mxu0
  %v176 = vadd.f32 %v93, %v175
  %177 = vdwg.mxu0
  %v178 = vmax.f32 %v116, 0.0
  %v179 = vmax.f32 %v136, 0.0
  %v180 = vmax.f32 %v156, 0.0
  %v181 = vmax.f32 %v176, 0.0
  %v182 = vld [vmem:[%s3] sm:$0xff]
  %v183 = vld [vmem:[%s3 + $0x8] sm:$0xff]
  %v184 = vld [vmem:[%s3 + $0x10] sm:$0xff]
  %v185 = vld [vmem:[%s3 + $0x18] sm:$0xff]
  %v186 = vld [vmem:[%s3 + $0x20] sm:$0xff]
  %v187 = vld [vmem:[%s3 + $0x28] sm:$0xff]
  %v188 = vld [vmem:[%s3 + $0x30] sm:$0xff]
  %v189 = vld [vmem:[%s3 + $0x38] sm:$0xff]
  %v190 = vld [vmem:[%s3 + $0x40] sm:$0xff]
  %v191 = vld [vmem:[%s3 + $0x48] sm:$0xff]
  %v192 = vld [vmem:[%s3 + $0x50] sm:$0xff]
  %v193 = vld [vmem:[%s3 + $0x58] sm:$0xff]
  %v194 = vld [vmem:[%s3 + $0x60] sm:$0xff]
  %v195 = vld [vmem:[%s3 + $0x68] sm:$0xff]
  %v196 = vld [vmem:[%s3 + $0x70] sm:$0xff]
  %v197 = vld [vmem:[%s3 + $0x78] sm:$0xff]
  %v198 = vld [vmem:[%s3 + $0x80] sm:$0xff]
  %v199 = vld [vmem:[%s3 + $0x88] sm:$0xff]
  %v200 = vld [vmem:[%s3 + $0x90] sm:$0xff]
  %v201 = vld [vmem:[%s3 + $0x98] sm:$0xff]
  %v202 = vld [vmem:[%s3 + $0xa0] sm:$0xff]
  %v203 = vld [vmem:[%s3 + $0xa8] sm:$0xff]
  %v204 = vld [vmem:[%s3 + $0xb0] sm:$0xff]
  %v205 = vld [vmem:[%s3 + $0xb8] sm:$0xff]
  %v206 = vld [vmem:[%s3 + $0xc0] sm:$0xff]
  %v207 = vld [vmem:[%s3 + $0xc8] sm:$0xff]
  %v208 = vld [vmem:[%s3 + $0xd0] sm:$0xff]
  %v209 = vld [vmem:[%s3 + $0xd8] sm:$0xff]
  %v210 = vld [vmem:[%s3 + $0xe0] sm:$0xff]
  %v211 = vld [vmem:[%s3 + $0xe8] sm:$0xff]
  %v212 = vld [vmem:[%s3 + $0xf0] sm:$0xff]
  %v213 = vld [vmem:[%s3 + $0xf8] sm:$0xff]
  %v214 = vld [vmem:[%s3 + $0x100] sm:$0xff]
  %v215 = vld [vmem:[%s3 + $0x108] sm:$0xff]
  %v216 = vld [vmem:[%s3 + $0x110] sm:$0xff]
  %v217 = vld [vmem:[%s3 + $0x118] sm:$0xff]
  %v218 = vld [vmem:[%s3 + $0x120] sm:$0xff]
  %v219 = vld [vmem:[%s3 + $0x128] sm:$0xff]
  %v220 = vld [vmem:[%s3 + $0x130] sm:$0xff]
  %v221 = vld [vmem:[%s3 + $0x138] sm:$0xff]
  %v222 = vld [vmem:[%s3 + $0x140] sm:$0xff]
  %v223 = vld [vmem:[%s3 + $0x148] sm:$0xff]
  %v224 = vld [vmem:[%s3 + $0x150] sm:$0xff]
  %v225 = vld [vmem:[%s3 + $0x158] sm:$0xff]
  %v226 = vld [vmem:[%s3 + $0x160] sm:$0xff]
  %v227 = vld [vmem:[%s3 + $0x168] sm:$0xff]
  %v228 = vld [vmem:[%s3 + $0x170] sm:$0xff]
  %v229 = vld [vmem:[%s3 + $0x178] sm:$0xff]
  %v230 = vld [vmem:[%s3 + $0x180] sm:$0xff]
  %v231 = vld [vmem:[%s3 + $0x188] sm:$0xff]
  %v232 = vld [vmem:[%s3 + $0x190] sm:$0xff]
  %v233 = vld [vmem:[%s3 + $0x198] sm:$0xff]
  %v234 = vld [vmem:[%s3 + $0x1a0] sm:$0xff]
  %v235 = vld [vmem:[%s3 + $0x1a8] sm:$0xff]
  %v236 = vld [vmem:[%s3 + $0x1b0] sm:$0xff]
  %v237 = vld [vmem:[%s3 + $0x1b8] sm:$0xff]
  %v238 = vld [vmem:[%s3 + $0x1c0] sm:$0xff]
  %v239 = vld [vmem:[%s3 + $0x1c8] sm:$0xff]
  %v240 = vld [vmem:[%s3 + $0x1d0] sm:$0xff]
  %v241 = vld [vmem:[%s3 + $0x1d8] sm:$0xff]
  %v242 = vld [vmem:[%s3 + $0x1e0] sm:$0xff]
  %v243 = vld [vmem:[%s3 + $0x1e8] sm:$0xff]
  %v244 = vld [vmem:[%s3 + $0x1f0] sm:$0xff]
  %v245 = vld [vmem:[%s3 + $0x1f8] sm:$0xff]
  %v246 = vld [vmem:[%s3 + $0x200] sm:$0xff]
  %v247 = vld [vmem:[%s3 + $0x208] sm:$0xff]
  %v248 = vld [vmem:[%s3 + $0x210] sm:$0xff]
  %v249 = vld [vmem:[%s3 + $0x218] sm:$0xff]
  %v250 = vld [vmem:[%s3 + $0x220] sm:$0xff]
  %v251 = vld [vmem:[%s3 + $0x228] sm:$0xff]
  %v252 = vld [vmem:[%s3 + $0x230] sm:$0xff]
  %v253 = vld [vmem:[%s3 + $0x238] sm:$0xff]
  %v254 = vld [vmem:[%s3 + $0x240] sm:$0xff]
  %v255 = vld [vmem:[%s3 + $0x248] sm:$0xff]
  %v256 = vld [vmem:[%s3 + $0x250] sm:$0xff]
  %v257 = vld [vmem:[%s3 + $0x258] sm:$0xff]
  %v258 = vld [vmem:[%s3 + $0x260] sm:$0xff]
  %v259 = vld [vmem:[%s3 + $0x268] sm:$0xff]
  %v260 = vld [vmem:[%s3 + $0x270] sm:$0xff]
  %v261 = vld [vmem:[%s3 + $0x278] sm:$0xff]
  %v262 = vld [vmem:[%s3 + $0x280] sm:$0xff]
  %v263 = vld [vmem:[%s3 + $0x288] sm:$0xff]
  %v264 = vld [vmem:[%s3 + $0x290] sm:$0xff]
  %v265 = vld [vmem:[%s3 + $0x298] sm:$0xff]
  %v266 = vld [vmem:[%s3 + $0x2a0] sm:$0xff]
  %v267 = vld [vmem:[%s3 + $0x2a8] sm:$0xff]
  %v268 = vld [vmem:[%s3 + $0x2b0] sm:$0xff]
  %v269 = vld [vmem:[%s3 + $0x2b8] sm:$0xff]
  %v270 = vld [vmem:[%s3 + $0x2c0] sm:$0xff]
  %v271 = vld [vmem:[%s3 + $0x2c8] sm:$0xff]
  %v272 = vld [vmem:[%s3 + $0x2d0] sm:$0xff]
  %v273 = vld [vmem:[%s3 + $0x2d8] sm:$0xff]
  %v274 = vld [vmem:[%s3 + $0x2e0] sm:$0xff]
  %v275 = vld [vmem:[%s3 + $0x2e8] sm:$0xff]
  %v276 = vld [vmem:[%s3 + $0x2f0] sm:$0xff]
  %v277 = vld [vmem:[%s3 + $0x2f8] sm:$0xff]
  %v278 = vld [vmem:[%s3 + $0x300] sm:$0xff]
  %v279 = vld [vmem:[%s3 + $0x308] sm:$0xff]
  %v280 = vld [vmem:[%s3 + $0x310] sm:$0xff]
  %v281 = vld [vmem:[%s3 + $0x318] sm:$0xff]
  %v282 = vld [vmem:[%s3 + $0x320] sm:$0xff]
  %v283 = vld [vmem:[%s3 + $0x328] sm:$0xff]
  %v284 = vld [vmem:[%s3 + $0x330] sm:$0xff]
  %v285 = vld [vmem:[%s3 + $0x338] sm:$0xff]
  %v286 = vld [vmem:[%s3 + $0x340] sm:$0xff]
  %v287 = vld [vmem:[%s3 + $0x348] sm:$0xff]
  %v288 = vld [vmem:[%s3 + $0x350] sm:$0xff]
  %v289 = vld [vmem:[%s3 + $0x358] sm:$0xff]
  %v290 = vld [vmem:[%s3 + $0x360] sm:$0xff]
  %v291 = vld [vmem:[%s3 + $0x368] sm:$0xff]
  %v292 = vld [vmem:[%s3 + $0x370] sm:$0xff]
  %v293 = vld [vmem:[%s3 + $0x378] sm:$0xff]
  %v294 = vld [vmem:[%s3 + $0x380] sm:$0xff]
  %v295 = vld [vmem:[%s3 + $0x388] sm:$0xff]
  %v296 = vld [vmem:[%s3 + $0x390] sm:$0xff]
  %v297 = vld [vmem:[%s3 + $0x398] sm:$0xff]
  %v298 = vld [vmem:[%s3 + $0x3a0] sm:$0xff]
  %v299 = vld [vmem:[%s3 + $0x3a8] sm:$0xff]
  %v300 = vld [vmem:[%s3 + $0x3b0] sm:$0xff]
  %v301 = vld [vmem:[%s3 + $0x3b8] sm:$0xff]
  %v302 = vld [vmem:[%s3 + $0x3c0] sm:$0xff]
  %v303 = vld [vmem:[%s3 + $0x3c8] sm:$0xff]
  %v304 = vld [vmem:[%s3 + $0x3d0] sm:$0xff]
  %v305 = vld [vmem:[%s3 + $0x3d8] sm:$0xff]
  %v306 = vld [vmem:[%s3 + $0x3e0] sm:$0xff]
  %v307 = vld [vmem:[%s3 + $0x3e8] sm:$0xff]
  %v308 = vld [vmem:[%s3 + $0x3f0] sm:$0xff]
  %v309 = vld [vmem:[%s3 + $0x3f8] sm:$0xff]
  %v310 = vld [vmem:[%s4] sm:$0x3]
  %v312 = vperm.slane %v310, 0
  %v313 = vperm.slane %v310, 1
  %316 = vmatpush.msra.mxu0 %v212
  %317 = vmatpush.msra.mxu0 %v210
  %318 = vmatpush.msra.mxu0 %v208
  %319 = vmatpush.msra.mxu0 %v206
  %320 = vmatpush.msra.mxu0 %v204
  %321 = vmatpush.msra.mxu0 %v202
  %322 = vmatpush.msra.mxu0 %v200
  %323 = vmatpush.msra.mxu0 %v198
  %324 = vmatpush.msra.mxu0 %v196
  %325 = vmatpush.msra.mxu0 %v194
  %326 = vmatpush.msra.mxu0 %v192
  %327 = vmatpush.msra.mxu0 %v190
  %328 = vmatpush.msra.mxu0 %v188
  %329 = vmatpush.msra.mxu0 %v186
  %330 = vmatpush.msra.mxu0 %v184
  %331 = vmatpush.msra.mxu0 %v182
  %332 = vmatmul.f32.gmra.mxu0 %v178
  %v333 = vpop.f32.mrf.mxu0
  %v334 = vadd.f32 %v312, %v333
  %335 = vdwg.mxu0
  %336 = vmatpush.msra.mxu0 %v244
  %337 = vmatpush.msra.mxu0 %v242
  %338 = vmatpush.msra.mxu0 %v240
  %339 = vmatpush.msra.mxu0 %v238
  %340 = vmatpush.msra.mxu0 %v236
  %341 = vmatpush.msra.mxu0 %v234
  %342 = vmatpush.msra.mxu0 %v232
  %343 = vmatpush.msra.mxu0 %v230
  %344 = vmatpush.msra.mxu0 %v228
  %345 = vmatpush.msra.mxu0 %v226
  %346 = vmatpush.msra.mxu0 %v224
  %347 = vmatpush.msra.mxu0 %v222
  %348 = vmatpush.msra.mxu0 %v220
  %349 = vmatpush.msra.mxu0 %v218
  %350 = vmatpush.msra.mxu0 %v216
  %351 = vmatpush.msra.mxu0 %v214
  %352 = vmatmul.f32.gmra.mxu0 %v179
  %v353 = vpop.f32.mrf.mxu0
  %v354 = vadd.f32 %v334, %v353
  %355 = vdwg.mxu0
  %356 = vmatpush.msra.mxu0 %v276
  %357 = vmatpush.msra.mxu0 %v274
  %358 = vmatpush.msra.mxu0 %v272
  %359 = vmatpush.msra.mxu0 %v270
  %360 = vmatpush.msra.mxu0 %v268
  %361 = vmatpush.msra.mxu0 %v266
  %362 = vmatpush.msra.mxu0 %v264
  %363 = vmatpush.msra.mxu0 %v262
  %364 = vmatpush.msra.mxu0 %v260
  %365 = vmatpush.msra.mxu0 %v258
  %366 = vmatpush.msra.mxu0 %v256
  %367 = vmatpush.msra.mxu0 %v254
  %368 = vmatpush.msra.mxu0 %v252
  %369 = vmatpush.msra.mxu0 %v250
  %370 = vmatpush.msra.mxu0 %v248
  %371 = vmatpush.msra.mxu0 %v246
  %372 = vmatmul.f32.gmra.mxu0 %v180
  %v373 = vpop.f32.mrf.mxu0
  %v374 = vadd.f32 %v354, %v373
  %375 = vdwg.mxu0
  %376 = vmatpush.msra.mxu0 %v308
  %377 = vmatpush.msra.mxu0 %v306
  %378 = vmatpush.msra.mxu0 %v304
  %379 = vmatpush.msra.mxu0 %v302
  %380 = vmatpush.msra.mxu0 %v300
  %381 = vmatpush.msra.mxu0 %v298
  %382 = vmatpush.msra.mxu0 %v296
  %383 = vmatpush.msra.mxu0 %v294
  %384 = vmatpush.msra.mxu0 %v292
  %385 = vmatpush.msra.mxu0 %v290
  %386 = vmatpush.msra.mxu0 %v288
  %387 = vmatpush.msra.mxu0 %v286
  %388 = vmatpush.msra.mxu0 %v284
  %389 = vmatpush.msra.mxu0 %v282
  %390 = vmatpush.msra.mxu0 %v280
  %391 = vmatpush.msra.mxu0 %v278
  %392 = vmatmul.f32.gmra.mxu0 %v181
  %v393 = vpop.f32.mrf.mxu0
  %v394 = vadd.f32 %v374, %v393
  %395 = vdwg.mxu0
  %396 = vmatpush.msra.mxu0 %v213
  %397 = vmatpush.msra.mxu0 %v211
  %398 = vmatpush.msra.mxu0 %v209
  %399 = vmatpush.msra.mxu0 %v207
  %400 = vmatpush.msra.mxu0 %v205
  %401 = vmatpush.msra.mxu0 %v203
  %402 = vmatpush.msra.mxu0 %v201
  %403 = vmatpush.msra.mxu0 %v199
  %404 = vmatpush.msra.mxu0 %v197
  %405 = vmatpush.msra.mxu0 %v195
  %406 = vmatpush.msra.mxu0 %v193
  %407 = vmatpush.msra.mxu0 %v191
  %408 = vmatpush.msra.mxu0 %v189
  %409 = vmatpush.msra.mxu0 %v187
  %410 = vmatpush.msra.mxu0 %v185
  %411 = vmatpush.msra.mxu0 %v183
  %412 = vmatmul.f32.gmra.mxu0 %v178
  %v413 = vpop.f32.mrf.mxu0
  %v414 = vadd.f32 %v313, %v413
  %415 = vdwg.mxu0
  %416 = vmatpush.msra.mxu0 %v245
  %417 = vmatpush.msra.mxu0 %v243
  %418 = vmatpush.msra.mxu0 %v241
  %419 = vmatpush.msra.mxu0 %v239
  %420 = vmatpush.msra.mxu0 %v237
  %421 = vmatpush.msra.mxu0 %v235
  %422 = vmatpush.msra.mxu0 %v233
  %423 = vmatpush.msra.mxu0 %v231
  %424 = vmatpush.msra.mxu0 %v229
  %425 = vmatpush.msra.mxu0 %v227
  %426 = vmatpush.msra.mxu0 %v225
  %427 = vmatpush.msra.mxu0 %v223
  %428 = vmatpush.msra.mxu0 %v221
  %429 = vmatpush.msra.mxu0 %v219
  %430 = vmatpush.msra.mxu0 %v217
  %431 = vmatpush.msra.mxu0 %v215
  %432 = vmatmul.f32.gmra.mxu0 %v179
  %v433 = vpop.f32.mrf.mxu0
  %v434 = vadd.f32 %v414, %v433
  %435 = vdwg.mxu0
  %436 = vmatpush.msra.mxu0 %v277
  %437 = vmatpush.msra.mxu0 %v275
  %438 = vmatpush.msra.mxu0 %v273
  %439 = vmatpush.msra.mxu0 %v271
  %440 = vmatpush.msra.mxu0 %v269
  %441 = vmatpush.msra.mxu0 %v267
  %442 = vmatpush.msra.mxu0 %v265
  %443 = vmatpush.msra.mxu0 %v263
  %444 = vmatpush.msra.mxu0 %v261
  %445 = vmatpush.msra.mxu0 %v259
  %446 = vmatpush.msra.mxu0 %v257
  %447 = vmatpush.msra.mxu0 %v255
  %448 = vmatpush.msra.mxu0 %v253
  %449 = vmatpush.msra.mxu0 %v251
  %450 = vmatpush.msra.mxu0 %v249
  %451 = vmatpush.msra.mxu0 %v247
  %452 = vmatmul.f32.gmra.mxu0 %v180
  %v453 = vpop.f32.mrf.mxu0
  %v454 = vadd.f32 %v434, %v453
  %455 = vdwg.mxu0
  %456 = vmatpush.msra.mxu0 %v309
  %457 = vmatpush.msra.mxu0 %v307
  %458 = vmatpush.msra.mxu0 %v305
  %459 = vmatpush.msra.mxu0 %v303
  %460 = vmatpush.msra.mxu0 %v301
  %461 = vmatpush.msra.mxu0 %v299
  %462 = vmatpush.msra.mxu0 %v297
  %463 = vmatpush.msra.mxu0 %v295
  %464 = vmatpush.msra.mxu0 %v293
  %465 = vmatpush.msra.mxu0 %v291
  %466 = vmatpush.msra.mxu0 %v289
  %467 = vmatpush.msra.mxu0 %v287
  %468 = vmatpush.msra.mxu0 %v285
  %469 = vmatpush.msra.mxu0 %v283
  %470 = vmatpush.msra.mxu0 %v281
  %471 = vmatpush.msra.mxu0 %v279
  %472 = vmatmul.f32.gmra.mxu0 %v181
  %v473 = vpop.f32.mrf.mxu0
  %v474 = vadd.f32 %v454, %v473
  %475 = vdwg.mxu0
  %vm476 = vcmask 523264
  %477 = vst.msk [vmem:[%s5] sm:$0xff] %vm476, %v394
  %479 = vrot.lane.b32.xlu0 %v394, 64
  %v480 = vpop.permute.xlu0 %479
  %482 = vst.msk [vmem:[%s6] sm:$0xff] %vm476, %v480
  %483 = vst.msk [vmem:[%s7] sm:$0xff] %vm476, %v474
  // Predicated region
  $region22: #{causal_model_quantile_regress.1} parent=0 // pred_check
    _
  $region23: #{causal_model_quantile_regress.1} parent=0 // pred_check_branch
    %485 = sbr.rel (0) target = $region25
  $region24: #{causal_model_quantile_regress.1} parent=0 // pred_region
    _
  $region25: #{causal_model_quantile_regress.1} parent=0 // pred_fallthru
    _
  // Predicated region
  $region26: #{causal_model_quantile_regress.1} parent=0 // pred_check
    _
  $region27: #{causal_model_quantile_regress.1} parent=0 // pred_check_branch
    %487 = sbr.rel (0) target = $region29
  $region28: #{causal_model_quantile_regress.1} parent=0 // pred_region
    _
  $region29: #{causal_model_quantile_regress.1} parent=0 // pred_fallthru
    _
  // Predicated region
  $region30: #{causal_model_quantile_regress.1} parent=0 // pred_check
    _
  $region31: #{causal_model_quantile_regress.1} parent=0 // pred_check_branch
    %489 = sbr.rel (0) target = $region33
  $region32: #{causal_model_quantile_regress.1} parent=0 // pred_region
    _
  $region33: #{causal_model_quantile_regress.1} parent=0 // pred_fallthru
    _
  // Predicated region
  $region34: #{causal_model_quantile_regress.1} parent=0 // pred_check
    _
  $region35: #{causal_model_quantile_regress.1} parent=0 // pred_check_branch
    %491 = sbr.rel (0) target = $region37
  $region36: #{causal_model_quantile_regress.1} parent=0 // pred_region
    _
  $region37: #{causal_model_quantile_regress.1} parent=0 // pred_fallthru
    _
  // Predicated region
  $region38: #{causal_model_quantile_regress.1} parent=0 // pred_check
    _
  $region39: #{causal_model_quantile_regress.1} parent=0 // pred_check_branch
    %493 = sbr.rel (0) target = $region41
  $region40: #{causal_model_quantile_regress.1} parent=0 // pred_region
    _
  $region41: #{causal_model_quantile_regress.1} parent=0 // pred_fallthru
    _
  // Predicated region
  $region42: #{causal_model_quantile_regress.1} parent=0 // pred_check
    _
  $region43: #{causal_model_quantile_regress.1} parent=0 // pred_check_branch
    %495 = sbr.rel (0) target = $region45
  $region44: #{causal_model_quantile_regress.1} parent=0 // pred_region
    _
  $region45: #{causal_model_quantile_regress.1} parent=0 // pred_fallthru
    _

</llo_original>
